<compile_context>
chip_gen: v7x
topology: tpu7x:2x2x1
jax: 0.10.0
libtpu: 0.0.40
codegen_flags: <defaults>
</compile_context>

<pallas_src>
import jax
import jax.numpy as jnp
from jax.experimental import pallas as pl
from jax.experimental.pallas import tpu as pltpu

INPUT_SIZE = 4
HIDDEN_SIZE = 5
OUTPUT_SIZE = 3

DEFAULT_TILE_B = 131072            # batch lanes per grid step (~3.5 MiB HBM/step)
VMEM_LIMIT_BYTES = 32 * 1024 * 1024


def _round_up(n, m):
    return ((n + m - 1) // m) * m


def mlp_kernel(xT_ref, w1_ref, b1_ref, w2_ref, b2_ref, oT_ref):
    """One batch tile of fc2(relu(fc1(x))) in feature-major (lane-dense) layout.

    xT_ref : (4, TB)  input tile, batch on the 128-wide lane axis
    w1_ref : (5, 4)   fc1.weight  [out, in]  (PyTorch nn.Linear layout)
    b1_ref : (5, 1)   fc1.bias as a column
    w2_ref : (3, 5)   fc2.weight  [out, in]
    b2_ref : (3, 1)   fc2.bias as a column
    oT_ref : (3, TB)  output tile, batch on lanes
    """
    xT = xT_ref[...].astype(jnp.float32)
    w1 = w1_ref[...]
    w2 = w2_ref[...]

    # Layer 1: hidden (5, TB) = W1 @ X^T + b1, unrolled over K=4 on the VPU.
    # Bias folded into the first MAC term (accumulator init), no separate add.
    h = w1[:, 0:1] * xT[0:1, :] + b1_ref[...]
    for k in range(1, INPUT_SIZE):
        h = h + w1[:, k:k + 1] * xT[k:k + 1, :]
    h = jnp.maximum(h, 0.0)                       # ReLU

    # Layer 2: out (3, TB) = W2 @ H + b2, unrolled over K=5 on the VPU.
    o = w2[:, 0:1] * h[0:1, :] + b2_ref[...]
    for k in range(1, HIDDEN_SIZE):
        o = o + w2[:, k:k + 1] * h[k:k + 1, :]

    # Perf note (v7x-only, optional per review): layer-1 could pack two batch
    # half-tiles into the 8 sublanes and the h[k] sublane-broadcasts could be
    # stride-0 VMEM reloads to offload the XLU; on v5e/v6e this is hidden under
    # HBM time, so it is intentionally left out for simplicity/robustness.
    oT_ref[...] = o.astype(oT_ref.dtype)


def mlp_forward_feature_major(xT, fc1_w, fc1_b, fc2_w, fc2_b, *, tile_b=DEFAULT_TILE_B):
    """Fast path with zero layout overhead.

    xT: (4, B) feature-major activations.  Returns (3, B).
    Weights/biases use the PyTorch nn.Linear layout:
      fc1_w (5, 4), fc1_b (5,), fc2_w (3, 5), fc2_b (3,).
    """
    feat, batch = xT.shape
    assert feat == INPUT_SIZE, f"expected ({INPUT_SIZE}, B) input, got {xT.shape}"

    max_tb = max(128, _round_up(int(tile_b), 128))
    if batch <= max_tb:
        # Single full-extent block: exact shapes, no lane padding/copies at all.
        tb = batch
        num_tiles = 1
    else:
        # Tile along the lane (batch) axis.  Cap the tile so there are >= 2 grid
        # steps (v7x: two TensorCores share the "parallel" axis).  A ragged last
        # tile is handled by Pallas: OOB lanes are garbage in / dropped out and
        # never mix with valid lanes (all compute is per-lane).
        tb = min(max_tb, _round_up(pl.cdiv(batch, 2), 128))
        num_tiles = pl.cdiv(batch, tb)

    xT = xT.astype(jnp.float32)
    w1 = fc1_w.astype(jnp.float32)                              # (5, 4)
    w2 = fc2_w.astype(jnp.float32)                              # (3, 5)
    b1c = fc1_b.reshape(HIDDEN_SIZE, 1).astype(jnp.float32)     # (5, 1)
    b2c = fc2_b.reshape(OUTPUT_SIZE, 1).astype(jnp.float32)     # (3, 1)

    return pl.pallas_call(
        mlp_kernel,
        out_shape=jax.ShapeDtypeStruct((OUTPUT_SIZE, batch), jnp.float32),
        grid_spec=pl.GridSpec(
            grid=(num_tiles,),
            in_specs=[
                # Activations: tiled along the lane (batch) axis.
                pl.BlockSpec((INPUT_SIZE, tb), lambda i: (0, i)),
                # Parameters: full arrays, constant index_map -> VMEM-resident
                # across all batch tiles (< 1 KiB total).
                pl.BlockSpec((HIDDEN_SIZE, INPUT_SIZE), lambda i: (0, 0)),
                pl.BlockSpec((HIDDEN_SIZE, 1), lambda i: (0, 0)),
                pl.BlockSpec((OUTPUT_SIZE, HIDDEN_SIZE), lambda i: (0, 0)),
                pl.BlockSpec((OUTPUT_SIZE, 1), lambda i: (0, 0)),
            ],
            out_specs=pl.BlockSpec((OUTPUT_SIZE, tb), lambda i: (0, i)),
        ),
        compiler_params=pltpu.CompilerParams(
            dimension_semantics=("parallel",),        # batch tiles independent
            vmem_limit_bytes=VMEM_LIMIT_BYTES,        # covers 2x double-buffered
        ),                                            # 4 MiB activation blocks
    )(xT, w1, b1c, w2, b2c)


def neural_network_forward(x, fc1_w, fc1_b, fc2_w, fc2_b, *, tile_b=DEFAULT_TILE_B):
    """PyTorch-compatible entry point: x (B, 4) -> (B, 3) = fc2(relu(fc1(x))).

    Layout note: this pays one XLA transpose pass on the input and one on the
    output (the kernel is feature-major).  Callers that can keep activations
    feature-major should use `mlp_forward_feature_major` directly and skip both.
    """
    outT = mlp_forward_feature_major(x.T, fc1_w, fc1_b, fc2_w, fc2_b, tile_b=tile_b)
    return outT.T


def reference_forward(x, fc1_w, fc1_b, fc2_w, fc2_b):
    hidden = jnp.maximum(x @ fc1_w.T + fc1_b[None, :], 0.0)
    return hidden @ fc2_w.T + fc2_b[None, :]


if __name__ == "__main__":
    key = jax.random.PRNGKey(0)
    kx1, kx2, kx3, kw1, kb1, kw2, kb2 = jax.random.split(key, 7)

    # Deterministic parameters, torch nn.Linear-style uniform init bounds.
    bound1 = 1.0 / (INPUT_SIZE ** 0.5)
    fc1_w = jax.random.uniform(kw1, (HIDDEN_SIZE, INPUT_SIZE),
                               minval=-bound1, maxval=bound1, dtype=jnp.float32)
    fc1_b = jax.random.uniform(kb1, (HIDDEN_SIZE,),
                               minval=-bound1, maxval=bound1, dtype=jnp.float32)
    bound2 = 1.0 / (HIDDEN_SIZE ** 0.5)
    fc2_w = jax.random.uniform(kw2, (OUTPUT_SIZE, HIDDEN_SIZE),
                               minval=-bound2, maxval=bound2, dtype=jnp.float32)
    fc2_b = jax.random.uniform(kb2, (OUTPUT_SIZE,),
                               minval=-bound2, maxval=bound2, dtype=jnp.float32)

    # 1) Small iris-like batch, PyTorch (B, 4) layout, single full-extent block.
    batch_a = 8
    xa = jax.random.normal(kx1, (batch_a, INPUT_SIZE), dtype=jnp.float32)
    out_a = jax.block_until_ready(
        neural_network_forward(xa, fc1_w, fc1_b, fc2_w, fc2_b))
    ref_a = reference_forward(xa, fc1_w, fc1_b, fc2_w, fc2_b)
    assert out_a.shape == (batch_a, OUTPUT_SIZE)
    assert jnp.allclose(out_a, ref_a, atol=1e-5, rtol=1e-5), "mismatch (B=8)"

    # 2) Non-multiple-of-128 batch, still a single exact block (no padding pass).
    batch_b = 300
    xb = jax.random.normal(kx2, (batch_b, INPUT_SIZE), dtype=jnp.float32)
    out_b = jax.block_until_ready(
        neural_network_forward(xb, fc1_w, fc1_b, fc2_w, fc2_b))
    ref_b = reference_forward(xb, fc1_w, fc1_b, fc2_w, fc2_b)
    assert out_b.shape == (batch_b, OUTPUT_SIZE)
    assert jnp.allclose(out_b, ref_b, atol=1e-5, rtol=1e-5), "mismatch (B=300)"

    # 3) Feature-major fast path (zero layout overhead), multi-tile grid
    #    (4 tiles of 256 lanes) with resident weights and "parallel" batch axis.
    batch_c = 1024
    xcT = jax.random.normal(kx3, (INPUT_SIZE, batch_c), dtype=jnp.float32)
    out_cT = jax.block_until_ready(
        mlp_forward_feature_major(xcT, fc1_w, fc1_b, fc2_w, fc2_b, tile_b=256))
    ref_c = reference_forward(xcT.T, fc1_w, fc1_b, fc2_w, fc2_b)
    assert out_cT.shape == (OUTPUT_SIZE, batch_c)
    assert jnp.allclose(out_cT.T, ref_c, atol=1e-5, rtol=1e-5), "mismatch (B=1024)"

    print("KERNEL_OK")
</pallas_src>

<mosaic_0001>
module attributes {stable_mosaic.version = 11 : i64} {
  func.func @mlp_kernel(%arg0: i32, %arg1: memref<4x8xf32, #tpu.memory_space<vmem>>, %arg2: memref<5x4xf32, #tpu.memory_space<vmem>>, %arg3: memref<5x1xf32, #tpu.memory_space<vmem>>, %arg4: memref<3x5xf32, #tpu.memory_space<vmem>>, %arg5: memref<3x1xf32, #tpu.memory_space<vmem>>, %arg6: memref<3x8xf32, #tpu.memory_space<vmem>>) attributes {dimension_semantics = [#tpu.dimension_semantics<parallel>], iteration_bounds = array<i64: 1>, scalar_prefetch = 0 : i64, scratch_operands = 0 : i64, tpu.core_type = #tpu.core_type<tc>, window_params = [{transform_indices = @transform_0, window_bounds = array<i64: 4, 8>}, {pipeline_mode = #tpu.pipeline_mode<synchronous>, transform_indices = @transform_1, window_bounds = array<i64: 5, 4>}, {pipeline_mode = #tpu.pipeline_mode<synchronous>, transform_indices = @transform_2, window_bounds = array<i64: 5, 1>}, {pipeline_mode = #tpu.pipeline_mode<synchronous>, transform_indices = @transform_3, window_bounds = array<i64: 3, 5>}, {pipeline_mode = #tpu.pipeline_mode<synchronous>, transform_indices = @transform_4, window_bounds = array<i64: 3, 1>}, {transform_indices = @transform_5, window_bounds = array<i64: 3, 8>}]} {
    %c0 = arith.constant 0 : index
    %c0_0 = arith.constant 0 : index
    %0 = vector.load %arg1[%c0, %c0_0] : memref<4x8xf32, #tpu.memory_space<vmem>>, vector<4x8xf32>
    %c0_1 = arith.constant 0 : index
    %c0_2 = arith.constant 0 : index
    %1 = vector.load %arg2[%c0_1, %c0_2] : memref<5x4xf32, #tpu.memory_space<vmem>>, vector<5x4xf32>
    %c0_3 = arith.constant 0 : index
    %c0_4 = arith.constant 0 : index
    %2 = vector.load %arg4[%c0_3, %c0_4] : memref<3x5xf32, #tpu.memory_space<vmem>>, vector<3x5xf32>
    %3 = vector.extract_strided_slice %1 {offsets = [0, 0], sizes = [5, 1], strides = [1, 1]} : vector<5x4xf32> to vector<5x1xf32>
    %4 = vector.extract_strided_slice %0 {offsets = [0, 0], sizes = [1, 8], strides = [1, 1]} : vector<4x8xf32> to vector<1x8xf32>
    %5 = vector.broadcast %3 : vector<5x1xf32> to vector<5x8xf32>
    %6 = vector.broadcast %4 : vector<1x8xf32> to vector<5x8xf32>
    %7 = arith.mulf %5, %6 : vector<5x8xf32>
    %c0_5 = arith.constant 0 : index
    %c0_6 = arith.constant 0 : index
    %8 = vector.load %arg3[%c0_5, %c0_6] : memref<5x1xf32, #tpu.memory_space<vmem>>, vector<5x1xf32>
    %9 = vector.broadcast %8 : vector<5x1xf32> to vector<5x8xf32>
    %10 = arith.addf %7, %9 : vector<5x8xf32>
    %11 = vector.extract_strided_slice %1 {offsets = [0, 1], sizes = [5, 1], strides = [1, 1]} : vector<5x4xf32> to vector<5x1xf32>
    %12 = vector.extract_strided_slice %0 {offsets = [1, 0], sizes = [1, 8], strides = [1, 1]} : vector<4x8xf32> to vector<1x8xf32>
    %13 = vector.broadcast %11 : vector<5x1xf32> to vector<5x8xf32>
    %14 = vector.broadcast %12 : vector<1x8xf32> to vector<5x8xf32>
    %15 = arith.mulf %13, %14 : vector<5x8xf32>
    %16 = arith.addf %10, %15 : vector<5x8xf32>
    %17 = vector.extract_strided_slice %1 {offsets = [0, 2], sizes = [5, 1], strides = [1, 1]} : vector<5x4xf32> to vector<5x1xf32>
    %18 = vector.extract_strided_slice %0 {offsets = [2, 0], sizes = [1, 8], strides = [1, 1]} : vector<4x8xf32> to vector<1x8xf32>
    %19 = vector.broadcast %17 : vector<5x1xf32> to vector<5x8xf32>
    %20 = vector.broadcast %18 : vector<1x8xf32> to vector<5x8xf32>
    %21 = arith.mulf %19, %20 : vector<5x8xf32>
    %22 = arith.addf %16, %21 : vector<5x8xf32>
    %23 = vector.extract_strided_slice %1 {offsets = [0, 3], sizes = [5, 1], strides = [1, 1]} : vector<5x4xf32> to vector<5x1xf32>
    %24 = vector.extract_strided_slice %0 {offsets = [3, 0], sizes = [1, 8], strides = [1, 1]} : vector<4x8xf32> to vector<1x8xf32>
    %25 = vector.broadcast %23 : vector<5x1xf32> to vector<5x8xf32>
    %26 = vector.broadcast %24 : vector<1x8xf32> to vector<5x8xf32>
    %27 = arith.mulf %25, %26 : vector<5x8xf32>
    %28 = arith.addf %22, %27 : vector<5x8xf32>
    %cst = arith.constant 0.000000e+00 : f32
    %29 = vector.broadcast %cst : f32 to vector<5x8xf32>
    %30 = arith.maximumf %28, %29 : vector<5x8xf32>
    %31 = vector.extract_strided_slice %2 {offsets = [0, 0], sizes = [3, 1], strides = [1, 1]} : vector<3x5xf32> to vector<3x1xf32>
    %32 = vector.extract_strided_slice %30 {offsets = [0, 0], sizes = [1, 8], strides = [1, 1]} : vector<5x8xf32> to vector<1x8xf32>
    %33 = vector.broadcast %31 : vector<3x1xf32> to vector<3x8xf32>
    %34 = vector.broadcast %32 : vector<1x8xf32> to vector<3x8xf32>
    %35 = arith.mulf %33, %34 : vector<3x8xf32>
    %c0_7 = arith.constant 0 : index
    %c0_8 = arith.constant 0 : index
    %36 = vector.load %arg5[%c0_7, %c0_8] : memref<3x1xf32, #tpu.memory_space<vmem>>, vector<3x1xf32>
    %37 = vector.broadcast %36 : vector<3x1xf32> to vector<3x8xf32>
    %38 = arith.addf %35, %37 : vector<3x8xf32>
    %39 = vector.extract_strided_slice %2 {offsets = [0, 1], sizes = [3, 1], strides = [1, 1]} : vector<3x5xf32> to vector<3x1xf32>
    %40 = vector.extract_strided_slice %30 {offsets = [1, 0], sizes = [1, 8], strides = [1, 1]} : vector<5x8xf32> to vector<1x8xf32>
    %41 = vector.broadcast %39 : vector<3x1xf32> to vector<3x8xf32>
    %42 = vector.broadcast %40 : vector<1x8xf32> to vector<3x8xf32>
    %43 = arith.mulf %41, %42 : vector<3x8xf32>
    %44 = arith.addf %38, %43 : vector<3x8xf32>
    %45 = vector.extract_strided_slice %2 {offsets = [0, 2], sizes = [3, 1], strides = [1, 1]} : vector<3x5xf32> to vector<3x1xf32>
    %46 = vector.extract_strided_slice %30 {offsets = [2, 0], sizes = [1, 8], strides = [1, 1]} : vector<5x8xf32> to vector<1x8xf32>
    %47 = vector.broadcast %45 : vector<3x1xf32> to vector<3x8xf32>
    %48 = vector.broadcast %46 : vector<1x8xf32> to vector<3x8xf32>
    %49 = arith.mulf %47, %48 : vector<3x8xf32>
    %50 = arith.addf %44, %49 : vector<3x8xf32>
    %51 = vector.extract_strided_slice %2 {offsets = [0, 3], sizes = [3, 1], strides = [1, 1]} : vector<3x5xf32> to vector<3x1xf32>
    %52 = vector.extract_strided_slice %30 {offsets = [3, 0], sizes = [1, 8], strides = [1, 1]} : vector<5x8xf32> to vector<1x8xf32>
    %53 = vector.broadcast %51 : vector<3x1xf32> to vector<3x8xf32>
    %54 = vector.broadcast %52 : vector<1x8xf32> to vector<3x8xf32>
    %55 = arith.mulf %53, %54 : vector<3x8xf32>
    %56 = arith.addf %50, %55 : vector<3x8xf32>
    %57 = vector.extract_strided_slice %2 {offsets = [0, 4], sizes = [3, 1], strides = [1, 1]} : vector<3x5xf32> to vector<3x1xf32>
    %58 = vector.extract_strided_slice %30 {offsets = [4, 0], sizes = [1, 8], strides = [1, 1]} : vector<5x8xf32> to vector<1x8xf32>
    %59 = vector.broadcast %57 : vector<3x1xf32> to vector<3x8xf32>
    %60 = vector.broadcast %58 : vector<1x8xf32> to vector<3x8xf32>
    %61 = arith.mulf %59, %60 : vector<3x8xf32>
    %62 = arith.addf %56, %61 : vector<3x8xf32>
    %c0_9 = arith.constant 0 : index
    %c0_10 = arith.constant 0 : index
    %63 = vector.load %arg6[%c0_9, %c0_10] : memref<3x8xf32, #tpu.memory_space<vmem>>, vector<3x8xf32>
    tpu.vector_store %arg6[%c0_9, %c0_10], %62 {strides = array<i32>} : memref<3x8xf32, #tpu.memory_space<vmem>>, vector<3x8xf32>,
    return
  }
  func.func @transform_0(%arg0: i32) -> (i32, i32) {
    %c0_i32 = arith.constant 0 : i32
    %c0_i32_0 = arith.constant 0 : i32
    return %c0_i32, %arg0 : i32, i32
  }
  func.func @transform_1(%arg0: i32) -> (i32, i32) {
    %c0_i32 = arith.constant 0 : i32
    %c0_i32_0 = arith.constant 0 : i32
    %c0_i32_1 = arith.constant 0 : i32
    return %c0_i32, %c0_i32_0 : i32, i32
  }
  func.func @transform_2(%arg0: i32) -> (i32, i32) {
    %c0_i32 = arith.constant 0 : i32
    %c0_i32_0 = arith.constant 0 : i32
    %c0_i32_1 = arith.constant 0 : i32
    return %c0_i32, %c0_i32_0 : i32, i32
  }
  func.func @transform_3(%arg0: i32) -> (i32, i32) {
    %c0_i32 = arith.constant 0 : i32
    %c0_i32_0 = arith.constant 0 : i32
    %c0_i32_1 = arith.constant 0 : i32
    return %c0_i32, %c0_i32_0 : i32, i32
  }
  func.func @transform_4(%arg0: i32) -> (i32, i32) {
    %c0_i32 = arith.constant 0 : i32
    %c0_i32_0 = arith.constant 0 : i32
    %c0_i32_1 = arith.constant 0 : i32
    return %c0_i32, %c0_i32_0 : i32, i32
  }
  func.func @transform_5(%arg0: i32) -> (i32, i32) {
    %c0_i32 = arith.constant 0 : i32
    %c0_i32_0 = arith.constant 0 : i32
    return %c0_i32, %arg0 : i32, i32
  }
}

</mosaic_0001>

<llo_original>
// kernel: tpu_custom_call.1
$region0: #{tpu_custom_call.1}
  #allocation0 [shape = 'u32[]', space=smem, size = 0x4, offset = 0x4, fixed_abs, tag = 'smem constant byte address 0x4 - core index']
  #allocation1 [shape = 'u32[144,128]{1,0:T(1,128)}', space=vmem, size = 0x12000, scoped, tag = 'internal scratch']
  %s0 = inlined_call_operand.vmem [shape: f32[4,8], index: 0, kind: input, shape index: {}]
  %s1 = inlined_call_operand.vmem [shape: f32[5,4], index: 1, kind: input, shape index: {}]
  %s2 = inlined_call_operand.vmem [shape: f32[5,1], index: 2, kind: input, shape index: {}]
  %s3 = inlined_call_operand.vmem [shape: f32[3,5], index: 3, kind: input, shape index: {}]
  %s4 = inlined_call_operand.vmem [shape: f32[3,1], index: 4, kind: input, shape index: {}]
  %s5 = inlined_call_operand.hbm [shape: f32[3,8], index: 5, kind: output, shape index: {}]
  %s6 = sld [smem:[#allocation0]]
  $region30: #{tpu_custom_call.1} parent=0
    _
  %s8 = ssub.s32 1, %s6
  %s9 = scalar_select 0, %s8, %s6
  $region1: #{tpu_custom_call.1} parent=0
    #allocation2 [shape = 'u8[2048]{0}', space=vmem, size = 0x800, scoped, tag = 'output window, operand 0, single buffered']
    #allocation3 [shape = 's32[1]{0}', space=sflag, size = 0x4, scoped, tag = 'scoped memory for tpu_custom_call.1']
    %10 = vsyncpa [#allocation3], 0
    // Predicated region
    $region2: #{tpu_custom_call.1} parent=1 // pred_check
      _
    $region3: #{tpu_custom_call.1} parent=1 // pred_check_branch
      %12 = sbr.rel (0) target = $region5
    $region4: #{tpu_custom_call.1} parent=1 // pred_region
      _
    $region5: #{tpu_custom_call.1} parent=1 // pred_fallthru
      _
    // Predicated region
    $region6: #{tpu_custom_call.1} parent=1 // pred_check
      _
    $region7: #{tpu_custom_call.1} parent=1 // pred_check_branch
      %14 = sbr.rel (0) target = $region9
    $region8: #{tpu_custom_call.1} parent=1 // pred_region
      _
    $region9: #{tpu_custom_call.1} parent=1 // pred_fallthru
      _
    // Predicated region
    $region10: #{tpu_custom_call.1} parent=1 // pred_check
      _
    $region11: #{tpu_custom_call.1} parent=1 // pred_check_branch
      %16 = sbr.rel (0) target = $region13
    $region12: #{tpu_custom_call.1} parent=1 // pred_region
      _
    $region13: #{tpu_custom_call.1} parent=1 // pred_fallthru
      _
    // Predicated region
    $region14: #{tpu_custom_call.1} parent=1 // pred_check
      _
    $region15: #{tpu_custom_call.1} parent=1 // pred_check_branch
      %18 = sbr.rel (0) target = $region17
    $region16: #{tpu_custom_call.1} parent=1 // pred_region
      _
    $region17: #{tpu_custom_call.1} parent=1 // pred_fallthru
      _
    // Predicated region
    $region18: #{tpu_custom_call.1} parent=1 // pred_check
      _
    $region19: #{tpu_custom_call.1} parent=1 // pred_check_branch
      %20 = sbr.rel (0) target = $region21
    $region20: #{tpu_custom_call.1} parent=1 // pred_region
      _
    $region21: #{tpu_custom_call.1} parent=1 // pred_fallthru
      _
    %v21 = vld [vmem:[%s0] sm:$0xf]
    %v22 = vld [vmem:[%s1] sm:$0x1f]
    %v23 = vld [vmem:[%s3] sm:$0x7]
    %25 = vset.pattern.permute.xlu0 0
    %26 = vperm.xlu0 %25, %v22
    %v27 = vpop.permute.xlu0 %26
    %v29 = vlaneseq
    %v30 = vshrl.u32 %v29, 7
    %v31 = vsub.s32 0, %v30
    %v32 = vrot.slane %v21, %v31
    %v33 = vmul.f32 %v27, %v32
    %v34 = vld [vmem:[%s2] sm:$0x1f]
    %36 = vset.pattern.permute.xlu0 0
    %37 = vperm.xlu0 %36, %v34
    %v38 = vpop.permute.xlu0 %37
    %v40 = vadd.f32 %v33, %v38
    %41 = vset.pattern.permute.xlu0 1
    %42 = vperm.xlu0 %41, %v22
    %v43 = vpop.permute.xlu0 %42
    %v45 = vlaneseq
    %v46 = vshrl.u32 %v45, 7
    %v47 = vsub.s32 1, %v46
    %v48 = vrot.slane %v21, %v47
    %v49 = vmul.f32 %v43, %v48
    %v50 = vadd.f32 %v40, %v49
    %51 = vset.pattern.permute.xlu0 2
    %52 = vperm.xlu0 %51, %v22
    %v53 = vpop.permute.xlu0 %52
    %v55 = vlaneseq
    %v56 = vshrl.u32 %v55, 7
    %v57 = vsub.s32 2, %v56
    %v58 = vrot.slane %v21, %v57
    %v59 = vmul.f32 %v53, %v58
    %v60 = vadd.f32 %v50, %v59
    %61 = vset.pattern.permute.xlu0 3
    %62 = vperm.xlu0 %61, %v22
    %v63 = vpop.permute.xlu0 %62
    %v65 = vlaneseq
    %v66 = vshrl.u32 %v65, 7
    %v67 = vsub.s32 3, %v66
    %v68 = vrot.slane %v21, %v67
    %v69 = vmul.f32 %v63, %v68
    %v70 = vadd.f32 %v60, %v69
    %v71 = vmax.f32 %v70, 0.0
    %73 = vset.pattern.permute.xlu0 0
    %74 = vperm.xlu0 %73, %v23
    %v75 = vpop.permute.xlu0 %74
    %v77 = vlaneseq
    %v78 = vshrl.u32 %v77, 7
    %v79 = vsub.s32 0, %v78
    %v80 = vrot.slane %v71, %v79
    %v81 = vmul.f32 %v75, %v80
    %v82 = vld [vmem:[%s4] sm:$0x7]
    %84 = vset.pattern.permute.xlu0 0
    %85 = vperm.xlu0 %84, %v82
    %v86 = vpop.permute.xlu0 %85
    %v88 = vadd.f32 %v81, %v86
    %89 = vset.pattern.permute.xlu0 1
    %90 = vperm.xlu0 %89, %v23
    %v91 = vpop.permute.xlu0 %90
    %v93 = vlaneseq
    %v94 = vshrl.u32 %v93, 7
    %v95 = vsub.s32 1, %v94
    %v96 = vrot.slane %v71, %v95
    %v97 = vmul.f32 %v91, %v96
    %v98 = vadd.f32 %v88, %v97
    %99 = vset.pattern.permute.xlu0 2
    %100 = vperm.xlu0 %99, %v23
    %v101 = vpop.permute.xlu0 %100
    %v103 = vlaneseq
    %v104 = vshrl.u32 %v103, 7
    %v105 = vsub.s32 2, %v104
    %v106 = vrot.slane %v71, %v105
    %v107 = vmul.f32 %v101, %v106
    %v108 = vadd.f32 %v98, %v107
    %109 = vset.pattern.permute.xlu0 3
    %110 = vperm.xlu0 %109, %v23
    %v111 = vpop.permute.xlu0 %110
    %v113 = vlaneseq
    %v114 = vshrl.u32 %v113, 7
    %v115 = vsub.s32 3, %v114
    %v116 = vrot.slane %v71, %v115
    %v117 = vmul.f32 %v111, %v116
    %v118 = vadd.f32 %v108, %v117
    %119 = vset.pattern.permute.xlu0 4
    %120 = vperm.xlu0 %119, %v23
    %v121 = vpop.permute.xlu0 %120
    %v123 = vlaneseq
    %v124 = vshrl.u32 %v123, 7
    %v125 = vsub.s32 4, %v124
    %v126 = vrot.slane %v71, %v125
    %v127 = vmul.f32 %v121, %v126
    %v128 = vadd.f32 %v118, %v127
    %vm129 = vcmask 59392
    %130 = vst.msk [vmem:[#allocation2] sm:$0x7] %vm129, %v128
    // Predicated region
    $region22: #{tpu_custom_call.1} parent=1 // pred_check
      _
    $region23: #{tpu_custom_call.1} parent=1 // pred_check_branch
      %132 = sbr.rel (0) target = $region25
    $region24: #{tpu_custom_call.1} parent=1 // pred_region
      %s134 = ssub.s32 64, 64
      %135 = vsyncadd [#allocation3], %s134
      %s137 = sshll.u32 [#allocation2], 4
      %s138 = int_to_ptr.vmem [resolvable:$true] %s137
      %140 = dma.vmem_to_hbm [thread:$0]  %s138, 64, %s5, [#allocation3]
    $region25: #{tpu_custom_call.1} parent=1 // pred_fallthru
      _
    // Predicated region
    $region26: #{tpu_custom_call.1} parent=1 // pred_check
      _
    $region27: #{tpu_custom_call.1} parent=1 // pred_check_branch
      %142 = sbr.rel (0) target = $region29
    $region28: #{tpu_custom_call.1} parent=1 // pred_region
      %143 = dma.done [#allocation3], 64
    $region29: #{tpu_custom_call.1} parent=1 // pred_fallthru
      _
    %144 = vsyncpa [#allocation3], 1

</llo_original>
